<compile_context>
chip_gen: v7x
topology: tpu7x:2x2x1
jax: 0.10.0
libtpu: 0.0.40
codegen_flags: <defaults>
</compile_context>

<pallas_src>
import functools

import jax
import jax.numpy as jnp
from jax.experimental import pallas as pl
from jax.experimental.pallas import tpu as pltpu


def _span_kernel(max_width, b_ref, e_ref, ta_ref, x_ref, head_ref, avg_ref, lhs_ref):
    f32 = jnp.float32
    cdt = jnp.bfloat16                    # MXU operand dtype (f32 accumulation)

    bcol = b_ref[...]                     # [TN, 1] int32
    ecol = e_ref[...]                     # [TN, 1] int32 (raw, possibly > S-1)
    ta = ta_ref[...]                      # [1, S]  f32 token-attention logits (hoisted)
    x = x_ref[...]                        # [S, D]  bf16, resident across span tiles
    S, D = x.shape
    TN = bcol.shape[0]

    seq = jax.lax.broadcasted_iota(jnp.int32, (TN, S), 1)           # [TN, S] token ids

    # ---- mention-token attention: per-row masked softmax (faithful to the ref) ----
    span_mask = (seq >= bcol) & (seq <= ecol)                        # [TN, S]
    logits = jnp.where(span_mask, ta, -jnp.inf)                      # [TN, S]
    m_row = jnp.max(logits, axis=-1, keepdims=True)                  # [TN, 1]
    p = jnp.where(span_mask, jnp.exp(ta - m_row), 0.0)               # [TN, S] unnormalized
    den = jnp.sum(p, axis=-1, keepdims=True)                         # [TN, 1]
    # NOTE: empty spans (e < b) -> den == 0 -> NaN head rows, same as the reference.

    # ---- span average: closed-form weights (no max_width-unrolled loops) ----
    hi = jnp.minimum(ecol, bcol + (max_width - 1))                   # last raw index used
    length = (hi - bcol + 1).astype(f32)                             # min(e-b+1, max_width)
    base = ((seq >= bcol) & (seq <= hi)).astype(f32)                 # [TN, S]
    extra = jnp.maximum(hi - (S - 1), 0).astype(f32)                 # clamp(b+w, S-1) pile-up
    counts = base + jnp.where(seq == (S - 1), extra, 0.0)
    A = counts * (1.0 / length)                                      # [TN, S]
    # TODO(synk): spans with e <= b-2 give a zero average here whereas the reference
    # produces NaN (0/0); e == b-1 matches the reference NaN.

    # ---- single fused MXU pass: stacked [2*TN, S] @ [S, D], f32 accumulation ----
    lhs_ref[0:TN, :] = p.astype(cdt)
    lhs_ref[TN:2 * TN, :] = A.astype(cdt)
    r = jnp.dot(lhs_ref[...], x, preferred_element_type=f32)         # [2*TN, D]

    head_ref[...] = r[0:TN] * (1.0 / den)                            # normalized attention head
    avg_ref[...] = r[TN:2 * TN]                                      # span average


def _vmem_limit_bytes():
    # ~3/4 of the generation's per-core VMEM (~48 MiB on v7x, ~96 MiB on v5e/v6e).
    try:
        cap = int(pltpu.get_tpu_info().vmem_capacity_bytes)
    except Exception:
        cap = 128 * 1024 * 1024
    return int(min(cap * 3 // 4, 100 * 1024 * 1024))


def _choose_span_tile(N, S, D, vmem_limit):
    # Budget TN from the live per-tile VMEM users:
    #   bf16 stacked LHS scratch     : 2*TN*S*2
    #   ~3 live f32 [TN,S] temporaries: 12*TN*S
    #   double-buffered f32 out tiles : 2*2*TN*D*4
    #   resident bf16 x (2 buffers)   : 4*S*D   (fixed)
    budget = int(vmem_limit * 0.6)
    fixed = 4 * S * D
    per_span = 16 * S + 16 * D
    cap = max(8, (budget - fixed) // max(per_span, 1))
    # Prefer MXU-friendly multiples of 128 (so 2*TN is a multiple of 256), then fall back.
    for cand in (512, 384, 256, 128, 64, 32, 16, 8):
        if cand <= cap and N % cand == 0:
            return cand
    return N


def span_endpoint_spanbert(inputs, b, e, max_width, emb_table, wtok, btok, *, span_tile=None):
    """Returns (span_representation [B, N, 4D+E], candidate_width_idx [B, N])."""
    B, S, D = inputs.shape
    N = b.shape[1]
    L, E = emb_table.shape
    assert B == 1, "attention_heads branch of the reference only supports batch size 1"

    b_i = b.astype(jnp.int32)
    e_i = e.astype(jnp.int32)
    e_c = jnp.minimum(e_i, S - 1)
    width = e_i - b_i                                               # candidate_width_idx

    x0 = inputs[0]                                                  # [S, D] f32

    # Pure gathers / span-independent work stays in the wrapper (XLA):
    b_vec = jnp.take(x0, b_i[0], axis=0)[None]                      # [1, N, D] exact f32
    e_vec = jnp.take(x0, e_c[0], axis=0)[None]                      # [1, N, D] exact f32
    width_emb = jnp.take(emb_table, width[0], axis=0)[None]         # [1, N, E]
    # TODO(synk): width >= max_span_length clamps (gather semantics) instead of raising
    # an index error like nn.Embedding would.

    # Span-independent token-attention logits ([S,D] @ [D,1]) hoisted out of the kernel.
    ta = (jnp.dot(x0, wtok)[:, 0] + btok[0, 0]).reshape(1, S).astype(jnp.float32)

    x_bf = x0.astype(jnp.bfloat16)                                  # MXU RHS, cast once

    vmem_limit = _vmem_limit_bytes()
    if span_tile is None:
        span_tile = _choose_span_tile(N, S, D, vmem_limit)
    assert N % span_tile == 0 and (span_tile % 8 == 0 or span_tile == N)

    kernel = functools.partial(_span_kernel, max_width)
    # TODO(synk): with a constant index_map x_bf is still double-buffered by the pipeline
    # (2*S*D*2 bytes); a single-buffered manual copy would need the span axis to be
    # "arbitrary", forfeiting megacore sharding on v7x, so we keep the BlockSpec path.
    head, avg = pl.pallas_call(
        kernel,
        out_shape=(jax.ShapeDtypeStruct((N, D), jnp.float32),       # head_attn_emb
                   jax.ShapeDtypeStruct((N, D), jnp.float32)),      # span average
        grid_spec=pltpu.PrefetchScalarGridSpec(
            num_scalar_prefetch=0,
            grid=(N // span_tile,),
            in_specs=[
                pl.BlockSpec((span_tile, 1), lambda j: (j, 0)),     # b
                pl.BlockSpec((span_tile, 1), lambda j: (j, 0)),     # e
                pl.BlockSpec((1, S), lambda j: (0, 0)),             # token-attn logits
                pl.BlockSpec((S, D), lambda j: (0, 0)),             # x (bf16, resident)
            ],
            out_specs=[
                pl.BlockSpec((span_tile, D), lambda j: (j, 0)),
                pl.BlockSpec((span_tile, D), lambda j: (j, 0)),
            ],
            scratch_shapes=[pltpu.VMEM((2 * span_tile, S), jnp.bfloat16)],
        ),
        compiler_params=pltpu.CompilerParams(
            dimension_semantics=("parallel",),
            vmem_limit_bytes=vmem_limit,
        ),
    )(b_i.reshape(N, 1), e_i.reshape(N, 1), ta, x_bf)

    # cat([b_vec, e_vec, width_emb, head_emb, avg_vec], -1); ff = identity.
    out = jnp.concatenate([b_vec, e_vec, width_emb, head[None], avg[None]], axis=-1)
    return out, width


def _reference(inputs, b, e, max_width, emb_table, wtok, btok):
    """Pure-JAX mirror of the PyTorch forward (for correctness checking)."""
    B, S, D = inputs.shape
    e_c = jnp.minimum(e, S - 1)
    batch_idx = jnp.arange(B)[:, None]
    b_vec = inputs[batch_idx, b]
    e_vec = inputs[batch_idx, e_c]
    width_emb = emb_table[e - b]
    # attention heads (batch 0 only, as in the reference)
    x0 = inputs[0]
    ta = (x0 @ wtok + btok[0, 0])[:, 0]
    tok = jnp.arange(S)[None, :]
    m = (tok >= b[0][:, None]) & (tok <= e[0][:, None])
    scores = jnp.where(m, ta[None, :], -jnp.inf)
    attn = jax.nn.softmax(scores, axis=1)
    head = (attn @ x0)[None]
    # span average
    w = jnp.arange(max_width)
    idx = b[:, :, None] + w[None, None, :]
    vecs = inputs[jnp.arange(B)[:, None, None], jnp.minimum(idx, S - 1)]
    amask = (idx <= e[:, :, None]).astype(jnp.float32)
    lengths = amask.sum(-1)
    probs = amask / lengths[..., None]
    avg = jnp.einsum("bnw,bnwd->bnd", probs, vecs)
    return jnp.concatenate([b_vec, e_vec, width_emb, head, avg], axis=-1), e - b


if __name__ == "__main__":
    # Small deterministic problem: B=1, S=16, D=32, N=16 spans, max_width=4,
    # max_span_length=8, span_embed=8; span_tile=8 -> 2 span tiles (exercises tiling).
    B, S, D, N = 1, 16, 32, 16
    MAX_WIDTH, MAX_SPAN_LEN, SPAN_EMBED = 4, 8, 8

    key = jax.random.PRNGKey(0)
    k1, k2, k3, k4, k5 = jax.random.split(key, 5)
    inputs = jax.random.normal(k1, (B, S, D), dtype=jnp.float32)
    b = jax.random.randint(k2, (B, N), 0, S, dtype=jnp.int32)
    widths = jax.random.randint(k3, (B, N), 0, MAX_WIDTH, dtype=jnp.int32)
    e = b + widths                                        # may exceed S-1 -> exercises clamping

    # Deterministic parameter init (matches __init__: normal(std=0.02), zero bias).
    emb_table = 0.02 * jax.random.normal(k4, (MAX_SPAN_LEN, SPAN_EMBED), dtype=jnp.float32)
    wtok = 0.02 * jax.random.normal(k5, (D, 1), dtype=jnp.float32)   # mention_token_attn.weight.T
    btok = jnp.zeros((1, 1), dtype=jnp.float32)                      # mention_token_attn.bias

    out, width_idx = span_endpoint_spanbert(
        inputs, b, e, MAX_WIDTH, emb_table, wtok, btok, span_tile=8)
    out = jax.block_until_ready(out)
    width_idx = jax.block_until_ready(width_idx)

    ref_out, ref_widx = _reference(inputs, b, e, MAX_WIDTH, emb_table, wtok, btok)
    assert out.shape == (B, N, 4 * D + SPAN_EMBED)
    # head/avg use bf16 MXU operands (f32 accumulation) -> bf16-level tolerance;
    # b_vec / e_vec / width_emb are exact f32 gathers.
    assert jnp.allclose(out, ref_out, rtol=2e-2, atol=2e-2), "kernel / reference mismatch"
    assert jnp.array_equal(width_idx, ref_widx)

    print("KERNEL_OK")
</pallas_src>

<mosaic_0001>
module attributes {stable_mosaic.version = 11 : i64} {
  func.func @_span_kernel(%arg0: i32, %arg1: memref<8x1xi32, #tpu.memory_space<vmem>>, %arg2: memref<8x1xi32, #tpu.memory_space<vmem>>, %arg3: memref<1x16xf32, #tpu.memory_space<vmem>>, %arg4: memref<16x32xbf16, #tpu.memory_space<vmem>>, %arg5: memref<8x32xf32, #tpu.memory_space<vmem>>, %arg6: memref<8x32xf32, #tpu.memory_space<vmem>>, %arg7: memref<16x16xbf16, #tpu.memory_space<vmem>>) attributes {dimension_semantics = [#tpu.dimension_semantics<parallel>], iteration_bounds = array<i64: 2>, scalar_prefetch = 0 : i64, scratch_operands = 1 : i64, tpu.core_type = #tpu.core_type<tc>, window_params = [{transform_indices = @transform_0, window_bounds = array<i64: 8, 1>}, {transform_indices = @transform_1, window_bounds = array<i64: 8, 1>}, {pipeline_mode = #tpu.pipeline_mode<synchronous>, transform_indices = @transform_2, window_bounds = array<i64: 1, 16>}, {pipeline_mode = #tpu.pipeline_mode<synchronous>, transform_indices = @transform_3, window_bounds = array<i64: 16, 32>}, {transform_indices = @transform_4, window_bounds = array<i64: 8, 32>}, {transform_indices = @transform_5, window_bounds = array<i64: 8, 32>}]} {
    %c0 = arith.constant 0 : index
    %c0_0 = arith.constant 0 : index
    %0 = vector.load %arg1[%c0, %c0_0] : memref<8x1xi32, #tpu.memory_space<vmem>>, vector<8x1xi32>
    %c0_1 = arith.constant 0 : index
    %c0_2 = arith.constant 0 : index
    %1 = vector.load %arg2[%c0_1, %c0_2] : memref<8x1xi32, #tpu.memory_space<vmem>>, vector<8x1xi32>
    %c0_3 = arith.constant 0 : index
    %c0_4 = arith.constant 0 : index
    %2 = vector.load %arg3[%c0_3, %c0_4] : memref<1x16xf32, #tpu.memory_space<vmem>>, vector<1x16xf32>
    %c0_5 = arith.constant 0 : index
    %c0_6 = arith.constant 0 : index
    %3 = vector.load %arg4[%c0_5, %c0_6] : memref<16x32xbf16, #tpu.memory_space<vmem>>, vector<16x32xbf16>
    %4 = tpu.iota {dimensions = array<i32: 1>} : vector<8x16xi32>
    %5 = vector.broadcast %0 : vector<8x1xi32> to vector<8x16xi32>
    %6 = arith.cmpi sge, %4, %5 : vector<8x16xi32>
    %7 = vector.broadcast %1 : vector<8x1xi32> to vector<8x16xi32>
    %8 = arith.cmpi sle, %4, %7 : vector<8x16xi32>
    %9 = arith.andi %6, %8 : vector<8x16xi1>
    %cst = arith.constant 0xFF800000 : f32
    %10 = vector.shape_cast %2 : vector<1x16xf32> to vector<1x16xf32>
    %11 = vector.broadcast %10 : vector<1x16xf32> to vector<8x16xf32>
    %12 = vector.broadcast %cst : f32 to vector<8x16xf32>
    %13 = arith.select %9, %11, %12 : vector<8x16xi1>, vector<8x16xf32>
    %cst_7 = arith.constant dense<0xFF800000> : vector<8xf32>
    %14 = vector.multi_reduction <maximumf>, %13, %cst_7 [1] : vector<8x16xf32> to vector<8xf32>
    %15 = vector.shape_cast %14 : vector<8xf32> to vector<8x1xf32>
    %16 = vector.broadcast %2 : vector<1x16xf32> to vector<8x16xf32>
    %17 = vector.broadcast %15 : vector<8x1xf32> to vector<8x16xf32>
    %18 = arith.subf %16, %17 : vector<8x16xf32>
    %19 = math.exp %18 : vector<8x16xf32>
    %cst_8 = arith.constant 0.000000e+00 : f32
    %20 = vector.broadcast %cst_8 : f32 to vector<8x16xf32>
    %21 = arith.select %9, %19, %20 : vector<8x16xi1>, vector<8x16xf32>
    %cst_9 = arith.constant dense<0.000000e+00> : vector<8xf32>
    %22 = vector.multi_reduction <add>, %21, %cst_9 [1] : vector<8x16xf32> to vector<8xf32>
    %23 = vector.shape_cast %22 : vector<8xf32> to vector<8x1xf32>
    %c3_i32 = arith.constant 3 : i32
    %24 = vector.broadcast %c3_i32 : i32 to vector<8x1xi32>
    %25 = arith.addi %0, %24 : vector<8x1xi32>
    %26 = arith.minsi %1, %25 : vector<8x1xi32>
    %27 = arith.subi %26, %0 : vector<8x1xi32>
    %c1_i32 = arith.constant 1 : i32
    %28 = vector.broadcast %c1_i32 : i32 to vector<8x1xi32>
    %29 = arith.addi %27, %28 : vector<8x1xi32>
    %30 = arith.sitofp %29 : vector<8x1xi32> to vector<8x1xf32>
    %31 = vector.broadcast %0 : vector<8x1xi32> to vector<8x16xi32>
    %32 = arith.cmpi sge, %4, %31 : vector<8x16xi32>
    %33 = vector.broadcast %26 : vector<8x1xi32> to vector<8x16xi32>
    %34 = arith.cmpi sle, %4, %33 : vector<8x16xi32>
    %35 = arith.andi %32, %34 : vector<8x16xi1>
    %36 = arith.extui %35 : vector<8x16xi1> to vector<8x16xi32>
    %37 = arith.sitofp %36 : vector<8x16xi32> to vector<8x16xf32>
    %c15_i32 = arith.constant 15 : i32
    %38 = vector.broadcast %c15_i32 : i32 to vector<8x1xi32>
    %39 = arith.subi %26, %38 : vector<8x1xi32>
    %c0_i32 = arith.constant 0 : i32
    %40 = vector.broadcast %c0_i32 : i32 to vector<8x1xi32>
    %41 = arith.maxsi %39, %40 : vector<8x1xi32>
    %42 = arith.sitofp %41 : vector<8x1xi32> to vector<8x1xf32>
    %c15_i32_10 = arith.constant 15 : i32
    %43 = vector.broadcast %c15_i32_10 : i32 to vector<8x16xi32>
    %44 = arith.cmpi eq, %4, %43 : vector<8x16xi32>
    %cst_11 = arith.constant 0.000000e+00 : f32
    %45 = vector.shape_cast %42 : vector<8x1xf32> to vector<8x1xf32>
    %46 = vector.broadcast %45 : vector<8x1xf32> to vector<8x16xf32>
    %47 = vector.broadcast %cst_11 : f32 to vector<8x16xf32>
    %48 = arith.select %44, %46, %47 : vector<8x16xi1>, vector<8x16xf32>
    %49 = arith.addf %37, %48 : vector<8x16xf32>
    %cst_12 = arith.constant 1.000000e+00 : f32
    %50 = vector.broadcast %cst_12 : f32 to vector<8x1xf32>
    %51 = arith.divf %50, %30 : vector<8x1xf32>
    %52 = vector.broadcast %51 : vector<8x1xf32> to vector<8x16xf32>
    %53 = arith.mulf %49, %52 : vector<8x16xf32>
    %54 = arith.truncf %21 : vector<8x16xf32> to vector<8x16xbf16>
    %c0_13 = arith.constant 0 : index
    %c0_14 = arith.constant 0 : index
    %55 = vector.load %arg7[%c0_13, %c0_14] : memref<16x16xbf16, #tpu.memory_space<vmem>>, vector<8x16xbf16>
    tpu.vector_store %arg7[%c0_13, %c0_14], %54 {strides = array<i32>} : memref<16x16xbf16, #tpu.memory_space<vmem>>, vector<8x16xbf16>,
    %56 = arith.truncf %53 : vector<8x16xf32> to vector<8x16xbf16>
    %c8 = arith.constant 8 : index
    %c0_15 = arith.constant 0 : index
    %57 = vector.load %arg7[%c8, %c0_15] : memref<16x16xbf16, #tpu.memory_space<vmem>>, vector<8x16xbf16>
    tpu.vector_store %arg7[%c8, %c0_15], %56 {strides = array<i32>} : memref<16x16xbf16, #tpu.memory_space<vmem>>, vector<8x16xbf16>,
    %c0_16 = arith.constant 0 : index
    %c0_17 = arith.constant 0 : index
    %58 = vector.load %arg7[%c0_16, %c0_17] : memref<16x16xbf16, #tpu.memory_space<vmem>>, vector<16x16xbf16>
    %cst_18 = arith.constant dense<0.000000e+00> : vector<16x32xf32>
    %59 = tpu.matmul %58, %3, %cst_18 {dimension_numbers = #tpu.dot_dimension_numbers<[1], [0], [0], [1], [0, 0, 1, 1], [], []>} : vector<16x16xbf16>, vector<16x32xbf16>, vector<16x32xf32> -> vector<16x32xf32>
    %60 = vector.extract_strided_slice %59 {offsets = [0, 0], sizes = [8, 32], strides = [1, 1]} : vector<16x32xf32> to vector<8x32xf32>
    %cst_19 = arith.constant 1.000000e+00 : f32
    %61 = vector.broadcast %cst_19 : f32 to vector<8x1xf32>
    %62 = arith.divf %61, %23 : vector<8x1xf32>
    %63 = vector.broadcast %62 : vector<8x1xf32> to vector<8x32xf32>
    %64 = arith.mulf %60, %63 : vector<8x32xf32>
    %c0_20 = arith.constant 0 : index
    %c0_21 = arith.constant 0 : index
    %65 = vector.load %arg5[%c0_20, %c0_21] : memref<8x32xf32, #tpu.memory_space<vmem>>, vector<8x32xf32>
    tpu.vector_store %arg5[%c0_20, %c0_21], %64 {strides = array<i32>} : memref<8x32xf32, #tpu.memory_space<vmem>>, vector<8x32xf32>,
    %66 = vector.extract_strided_slice %59 {offsets = [8, 0], sizes = [8, 32], strides = [1, 1]} : vector<16x32xf32> to vector<8x32xf32>
    %c0_22 = arith.constant 0 : index
    %c0_23 = arith.constant 0 : index
    %67 = vector.load %arg6[%c0_22, %c0_23] : memref<8x32xf32, #tpu.memory_space<vmem>>, vector<8x32xf32>
    tpu.vector_store %arg6[%c0_22, %c0_23], %66 {strides = array<i32>} : memref<8x32xf32, #tpu.memory_space<vmem>>, vector<8x32xf32>,
    return
  }
  func.func @transform_0(%arg0: i32) -> (i32, i32) {
    %c0_i32 = arith.constant 0 : i32
    %c0_i32_0 = arith.constant 0 : i32
    return %arg0, %c0_i32 : i32, i32
  }
  func.func @transform_1(%arg0: i32) -> (i32, i32) {
    %c0_i32 = arith.constant 0 : i32
    %c0_i32_0 = arith.constant 0 : i32
    return %arg0, %c0_i32 : i32, i32
  }
  func.func @transform_2(%arg0: i32) -> (i32, i32) {
    %c0_i32 = arith.constant 0 : i32
    %c0_i32_0 = arith.constant 0 : i32
    %c0_i32_1 = arith.constant 0 : i32
    return %c0_i32, %c0_i32_0 : i32, i32
  }
  func.func @transform_3(%arg0: i32) -> (i32, i32) {
    %c0_i32 = arith.constant 0 : i32
    %c0_i32_0 = arith.constant 0 : i32
    %c0_i32_1 = arith.constant 0 : i32
    return %c0_i32, %c0_i32_0 : i32, i32
  }
  func.func @transform_4(%arg0: i32) -> (i32, i32) {
    %c0_i32 = arith.constant 0 : i32
    %c0_i32_0 = arith.constant 0 : i32
    return %arg0, %c0_i32 : i32, i32
  }
  func.func @transform_5(%arg0: i32) -> (i32, i32) {
    %c0_i32 = arith.constant 0 : i32
    %c0_i32_0 = arith.constant 0 : i32
    return %arg0, %c0_i32 : i32, i32
  }
}

</mosaic_0001>

<llo_original>
// kernel: tpu_custom_call.1
$region0: #{tpu_custom_call.1}
  #allocation0 [shape = 'u32[]', space=smem, size = 0x4, offset = 0x4, fixed_abs, tag = 'smem constant byte address 0x4 - core index']
  #allocation1 [shape = 'u32[144,128]{1,0:T(1,128)}', space=vmem, size = 0x12000, scoped, tag = 'internal scratch']
  #allocation2 [shape = 'bf16[16,16]{1,0:T(16,128)(2,1)}', space=vmem, size = 0x1000, scoped, tag = 'scratch operand']
  %s0 = inlined_call_operand.hbm [shape: s32[16,1], index: 0, kind: input, shape index: {}]
  %s1 = inlined_call_operand.hbm [shape: s32[16,1], index: 1, kind: input, shape index: {}]
  %s2 = inlined_call_operand.hbm [shape: f32[1,16], index: 2, kind: input, shape index: {}]
  %s3 = inlined_call_operand.hbm [shape: bf16[16,32], index: 3, kind: input, shape index: {}]
  %s4 = inlined_call_operand.hbm [shape: f32[16,32], index: 4, kind: output, shape index: {0}]
  %s5 = inlined_call_operand.hbm [shape: f32[16,32], index: 5, kind: output, shape index: {1}]
  %6 = xla_tuple %s4, %s5
  %s7 = sld [smem:[#allocation0]]
  $region73: #{tpu_custom_call.1} parent=0
    _
  %s9 = ssub.s32 1, %s7
  %s10 = scalar_select 0, %s9, %s7
  $region1: #{tpu_custom_call.1} parent=0
    #allocation3 [shape = 'u8[8192]{0}', space=vmem, size = 0x2000, scoped, tag = 'input window, operand 0']
    #allocation4 [shape = 's32[2]{0}', space=sflag, size = 0x8, scoped, tag = 'scoped memory for tpu_custom_call.1']
    #allocation5 [shape = 's32[2]{0}', space=sflag, size = 0x8, scoped, tag = 'scoped memory for tpu_custom_call.1']
    #allocation6 [shape = 'u8[8192]{0}', space=vmem, size = 0x2000, scoped, tag = 'input window, operand 1']
    #allocation7 [shape = 's32[2]{0}', space=sflag, size = 0x8, scoped, tag = 'scoped memory for tpu_custom_call.1']
    #allocation8 [shape = 'u8[512]{0}', space=vmem, size = 0x400, scoped, tag = 'input window, operand 2, single buffered']
    #allocation9 [shape = 'u8[4096]{0}', space=vmem, size = 0x1000, scoped, tag = 'input window, operand 3, single buffered']
    #allocation10 [shape = 's32[1]{0}', space=sflag, size = 0x4, scoped, tag = 'scoped memory for tpu_custom_call.1']
    #allocation11 [shape = 'u8[8192]{0}', space=vmem, size = 0x2000, scoped, tag = 'output window, operand 0']
    #allocation12 [shape = 'u8[8192]{0}', space=vmem, size = 0x2000, scoped, tag = 'output window, operand 1']
    #allocation13 [shape = 's32[2]{0}', space=sflag, size = 0x8, scoped, tag = 'scoped memory for tpu_custom_call.1']
    %11 = vsyncpa [#allocation4], 0
    %s12 = scalar_lea.sflag [#allocation4], 1
    %13 = vsyncpa %s12, 0
    %14 = vsyncpa [#allocation7], 0
    %s15 = scalar_lea.sflag [#allocation7], 1
    %16 = vsyncpa %s15, 0
    %17 = vsyncpa [#allocation10], 0
    %18 = vsyncpa [#allocation5], 0
    %s19 = scalar_lea.sflag [#allocation5], 1
    %20 = vsyncpa %s19, 0
    %21 = vsyncpa [#allocation13], 0
    %s22 = scalar_lea.sflag [#allocation13], 1
    %23 = vsyncpa %s22, 0
    loop: start=0, step=1, limit=4
    $region2: #{tpu_custom_call.1} parent=1 // loop_pre_header
      _
    $region3: #{tpu_custom_call.1} parent=1 // loop_header
      %s25 = sphi 0, %s29
      %p26 = scmp.ge.s32.totalorder %s25, 4
      %s35 = sphi 0, %s37
      %s38 = sphi 0, %s35
      %s39 = sphi 0, %s38
      %s55 = sphi 0, %s39
      %s61 = sphi 0, %s63
      %s64 = sphi 0, %s61
      %s65 = sphi 0, %s64
      %s81 = sphi 0, %s65
      %s85 = sphi 0, %s85
      %s87 = sphi 0, %s85
      %s88 = sphi 0, %s87
      %s102 = sphi 0, %s88
      %s106 = sphi 0, %s106
      %s108 = sphi 0, %s106
      %s109 = sphi 0, %s108
      %s123 = sphi 0, %s109
      %s129 = sphi 0, %s131
      %s132 = sphi 0, %s129
      %s133 = sphi 0, %s132
      %s149 = sphi 0, %s133
      %s155 = sphi 0, %s157
      %s158 = sphi 0, %s155
      %s159 = sphi 0, %s158
      %s175 = sphi 0, %s159
    $region4: #{tpu_custom_call.1} parent=1 // loop_header_branch
      %28 = sbr.rel (%p26) target = $region8
    $region5: #{tpu_custom_call.1} parent=1 // loop_body
      %s30 = ssub.s32 %s25, 1
      %s31 = ssub.s32 %s25, 2
      %s32 = sadd.s32 %s25, 1
      %s33 = ssub.s32 %s25, %s32
      %p34 = scmp.eq.s32.totalorder %s33, 0
      %s36 = sadd.s32 %s35, 1
      %s37 = scalar_select %p34, %s35, %s36
      %p40 = pneg %p34
      %p41 = scmp.eq.s32.totalorder %s25, 1
      %p42 = por %p40, %p41
      %p43 = scmp.ne.s32.totalorder %s35, %s38
      %p44 = scmp.eq.s32.totalorder %s25, 0
      %p45 = por %p43, %p44
      %p46 = scmp.ne.s32.totalorder %s35, %s38
      %p47 = scmp.eq.s32.totalorder %s30, 1
      %p48 = por %p46, %p47
      %p49 = scmp.ne.s32.totalorder %s38, %s39
      %p50 = scmp.eq.s32.totalorder %s30, 0
      %p51 = por %p49, %p50
      %p52 = scmp.ne.s32.totalorder %s38, %s39
      %p53 = scmp.eq.s32.totalorder %s31, 1
      %p54 = por %p52, %p53
      %p56 = scmp.ne.s32.totalorder %s39, %s55
      %p57 = scmp.eq.s32.totalorder %s31, 0
      %p58 = por %p56, %p57
      %s59 = ssub.s32 %s25, %s32
      %p60 = scmp.eq.s32.totalorder %s59, 0
      %s62 = sadd.s32 %s61, 1
      %s63 = scalar_select %p60, %s61, %s62
      %p66 = pneg %p60
      %p67 = scmp.eq.s32.totalorder %s25, 1
      %p68 = por %p66, %p67
      %p69 = scmp.ne.s32.totalorder %s61, %s64
      %p70 = scmp.eq.s32.totalorder %s25, 0
      %p71 = por %p69, %p70
      %p72 = scmp.ne.s32.totalorder %s61, %s64
      %p73 = scmp.eq.s32.totalorder %s30, 1
      %p74 = por %p72, %p73
      %p75 = scmp.ne.s32.totalorder %s64, %s65
      %p76 = scmp.eq.s32.totalorder %s30, 0
      %p77 = por %p75, %p76
      %p78 = scmp.ne.s32.totalorder %s64, %s65
      %p79 = scmp.eq.s32.totalorder %s31, 1
      %p80 = por %p78, %p79
      %p82 = scmp.ne.s32.totalorder %s65, %s81
      %p83 = scmp.eq.s32.totalorder %s31, 0
      %p84 = por %p82, %p83
      %s86 = sadd.s32 %s85, 1
      %p89 = scmp.eq.s32.totalorder %s25, 1
      %p90 = scmp.ne.s32.totalorder %s85, %s87
      %p91 = scmp.eq.s32.totalorder %s25, 0
      %p92 = por %p90, %p91
      %p93 = scmp.ne.s32.totalorder %s85, %s87
      %p94 = scmp.eq.s32.totalorder %s30, 1
      %p95 = por %p93, %p94
      %p96 = scmp.ne.s32.totalorder %s87, %s88
      %p97 = scmp.eq.s32.totalorder %s30, 0
      %p98 = por %p96, %p97
      %p99 = scmp.ne.s32.totalorder %s87, %s88
      %p100 = scmp.eq.s32.totalorder %s31, 1
      %p101 = por %p99, %p100
      %p103 = scmp.ne.s32.totalorder %s88, %s102
      %p104 = scmp.eq.s32.totalorder %s31, 0
      %p105 = por %p103, %p104
      %s107 = sadd.s32 %s106, 1
      %p110 = scmp.eq.s32.totalorder %s25, 1
      %p111 = scmp.ne.s32.totalorder %s106, %s108
      %p112 = scmp.eq.s32.totalorder %s25, 0
      %p113 = por %p111, %p112
      %p114 = scmp.ne.s32.totalorder %s106, %s108
      %p115 = scmp.eq.s32.totalorder %s30, 1
      %p116 = por %p114, %p115
      %p117 = scmp.ne.s32.totalorder %s108, %s109
      %p118 = scmp.eq.s32.totalorder %s30, 0
      %p119 = por %p117, %p118
      %p120 = scmp.ne.s32.totalorder %s108, %s109
      %p121 = scmp.eq.s32.totalorder %s31, 1
      %p122 = por %p120, %p121
      %p124 = scmp.ne.s32.totalorder %s109, %s123
      %p125 = scmp.eq.s32.totalorder %s31, 0
      %p126 = por %p124, %p125
      %s127 = ssub.s32 %s25, %s32
      %p128 = scmp.eq.s32.totalorder %s127, 0
      %s130 = sadd.s32 %s129, 1
      %s131 = scalar_select %p128, %s129, %s130
      %p134 = pneg %p128
      %p135 = scmp.eq.s32.totalorder %s25, 1
      %p136 = por %p134, %p135
      %p137 = scmp.ne.s32.totalorder %s129, %s132
      %p138 = scmp.eq.s32.totalorder %s25, 0
      %p139 = por %p137, %p138
      %p140 = scmp.ne.s32.totalorder %s129, %s132
      %p141 = scmp.eq.s32.totalorder %s30, 1
      %p142 = por %p140, %p141
      %p143 = scmp.ne.s32.totalorder %s132, %s133
      %p144 = scmp.eq.s32.totalorder %s30, 0
      %p145 = por %p143, %p144
      %p146 = scmp.ne.s32.totalorder %s132, %s133
      %p147 = scmp.eq.s32.totalorder %s31, 1
      %p148 = por %p146, %p147
      %p150 = scmp.ne.s32.totalorder %s133, %s149
      %p151 = scmp.eq.s32.totalorder %s31, 0
      %p152 = por %p150, %p151
      %s153 = ssub.s32 %s25, %s32
      %p154 = scmp.eq.s32.totalorder %s153, 0
      %s156 = sadd.s32 %s155, 1
      %s157 = scalar_select %p154, %s155, %s156
      %p160 = pneg %p154
      %p161 = scmp.eq.s32.totalorder %s25, 1
      %p162 = por %p160, %p161
      %p163 = scmp.ne.s32.totalorder %s155, %s158
      %p164 = scmp.eq.s32.totalorder %s25, 0
      %p165 = por %p163, %p164
      %p166 = scmp.ne.s32.totalorder %s155, %s158
      %p167 = scmp.eq.s32.totalorder %s30, 1
      %p168 = por %p166, %p167
      %p169 = scmp.ne.s32.totalorder %s158, %s159
      %p170 = scmp.eq.s32.totalorder %s30, 0
      %p171 = por %p169, %p170
      %p172 = scmp.ne.s32.totalorder %s158, %s159
      %p173 = scmp.eq.s32.totalorder %s31, 1
      %p174 = por %p172, %p173
      %p176 = scmp.ne.s32.totalorder %s159, %s175
      %p177 = scmp.eq.s32.totalorder %s31, 0
      %p178 = por %p176, %p177
      %p179 = scmp.le.s32.totalorder 1, %s25
      %p180 = scmp.lt.s32.totalorder %s25, 3
      %p181 = pnand %p179, %p180
      %p182 = pneg %p181
      // Predicated region
      $region9: #{tpu_custom_call.1} parent=5 // pred_check
        _
      $region10: #{tpu_custom_call.1} parent=5 // pred_check_branch
        %184 = sbr.rel (%p181) target = $region12
      $region11: #{tpu_custom_call.1} parent=5 // pred_region
        %s185 = ssub.s32 %s25, 1
        // Predicated region
        $region13: #{tpu_custom_call.1} parent=11 // pred_check
          %p186 = pneg %p98
        $region14: #{tpu_custom_call.1} parent=11 // pred_check_branch
          %188 = sbr.rel (%p186) target = $region16
        $region15: #{tpu_custom_call.1} parent=11 // pred_region
          %s190 = ssub.s32 16, 16
          %191 = vsyncadd [#allocation7], %s190
          %s193 = sshll.u32 [#allocation8], 4
          %s194 = int_to_ptr.vmem [resolvable:$true] %s193
          %196 = dma.hbm_to_vmem [thread:$0]  %s2, 16, %s194, [#allocation7]
        $region16: #{tpu_custom_call.1} parent=11 // pred_fallthru
          _
        // Predicated region
        $region17: #{tpu_custom_call.1} parent=11 // pred_check
          %p197 = pneg %p119
        $region18: #{tpu_custom_call.1} parent=11 // pred_check_branch
          %199 = sbr.rel (%p197) target = $region20
        $region19: #{tpu_custom_call.1} parent=11 // pred_region
          %s201 = ssub.s32 128, 128
          %202 = vsyncadd [#allocation10], %s201
          %s203 = sshll.u32 [#allocation9], 4
          %s204 = int_to_ptr.vmem [resolvable:$true] %s203
          %209 = dma.hbm_to_vmem [thread:$0]  %s3, 128, %s204, [#allocation10], 64, 64, 4
        $region20: #{tpu_custom_call.1} parent=11 // pred_fallthru
          _
      $region12: #{tpu_custom_call.1} parent=5 // pred_fallthru
        _
      %p210 = scmp.lt.s32.totalorder %s25, 2
      // Predicated region
      $region21: #{tpu_custom_call.1} parent=5 // pred_check
        %p211 = pneg %p210
      $region22: #{tpu_custom_call.1} parent=5 // pred_check_branch
        %213 = sbr.rel (%p211) target = $region24
      $region23: #{tpu_custom_call.1} parent=5 // pred_region
        // Predicated region
        $region25: #{tpu_custom_call.1} parent=23 // pred_check
          %p214 = pneg %p45
        $region26: #{tpu_custom_call.1} parent=23 // pred_check_branch
          %216 = sbr.rel (%p214) target = $region28
        $region27: #{tpu_custom_call.1} parent=23 // pred_region
          %s217 = sand.u32 %s35, 1
          %s218 = scalar_lea.sflag [#allocation4], %s217
          %s219 = sand.u32 %s35, 1
          %s220 = smul.addr %s219, 8
          %s221 = scalar_lea.vmem [#allocation3], %s220
          %s223 = ssub.s32 128, 128
          %224 = vsyncadd %s218, %s223
          %s225 = smul.addr %s25, 128
          %s226 = scalar_lea.hbm %s0, %s225
          %s228 = sshll.u32 %s221, 4
          %s229 = int_to_ptr.vmem [resolvable:$true] %s228
          %231 = dma.hbm_to_vmem [thread:$0]  %s226, 128, %s229, %s218
        $region28: #{tpu_custom_call.1} parent=23 // pred_fallthru
          _
        // Predicated region
        $region29: #{tpu_custom_call.1} parent=23 // pred_check
          %p232 = pneg %p71
        $region30: #{tpu_custom_call.1} parent=23 // pred_check_branch
          %234 = sbr.rel (%p232) target = $region32
        $region31: #{tpu_custom_call.1} parent=23 // pred_region
          %s235 = sand.u32 %s25, 1
          %s236 = scalar_lea.sflag [#allocation7], %s235
          %s237 = sand.u32 %s61, 1
          %s238 = smul.addr %s237, 8
          %s239 = scalar_lea.vmem [#allocation6], %s238
          %s241 = ssub.s32 128, 128
          %242 = vsyncadd %s236, %s241
          %s243 = smul.addr %s25, 128
          %s244 = scalar_lea.hbm %s1, %s243
          %s246 = sshll.u32 %s239, 4
          %s247 = int_to_ptr.vmem [resolvable:$true] %s246
          %249 = dma.hbm_to_vmem [thread:$0]  %s244, 128, %s247, %s236
        $region32: #{tpu_custom_call.1} parent=23 // pred_fallthru
          _
      $region24: #{tpu_custom_call.1} parent=5 // pred_fallthru
        _
      %p250 = scmp.le.s32.totalorder 1, %s25
      %p251 = scmp.lt.s32.totalorder %s25, 3
      %p252 = pnand %p250, %p251
      %p253 = pneg %p252
      // Predicated region
      $region33: #{tpu_custom_call.1} parent=5 // pred_check
        _
      $region34: #{tpu_custom_call.1} parent=5 // pred_check_branch
        %255 = sbr.rel (%p252) target = $region36
      $region35: #{tpu_custom_call.1} parent=5 // pred_region
        %s256 = ssub.s32 %s25, 1
        %s257 = sand.u32 %s38, 1
        %s258 = scalar_lea.sflag [#allocation4], %s257
        %s259 = sand.u32 %s38, 1
        %s260 = smul.addr %s259, 8
        %s261 = scalar_lea.vmem [#allocation3], %s260
        // Predicated region
        $region37: #{tpu_custom_call.1} parent=35 // pred_check
          %p262 = pneg %p51
        $region38: #{tpu_custom_call.1} parent=35 // pred_check_branch
          %264 = sbr.rel (%p262) target = $region40
        $region39: #{tpu_custom_call.1} parent=35 // pred_region
          %265 = dma.done %s258, 128
        $region40: #{tpu_custom_call.1} parent=35 // pred_fallthru
          _
        %s266 = sand.u32 %s30, 1
        %s267 = scalar_lea.sflag [#allocation7], %s266
        %s268 = sand.u32 %s64, 1
        %s269 = smul.addr %s268, 8
        %s270 = scalar_lea.vmem [#allocation6], %s269
        // Predicated region
        $region41: #{tpu_custom_call.1} parent=35 // pred_check
          %p271 = pneg %p77
        $region42: #{tpu_custom_call.1} parent=35 // pred_check_branch
          %273 = sbr.rel (%p271) target = $region44
        $region43: #{tpu_custom_call.1} parent=35 // pred_region
          %274 = dma.done %s267, 128
        $region44: #{tpu_custom_call.1} parent=35 // pred_fallthru
          _
        // Predicated region
        $region45: #{tpu_custom_call.1} parent=35 // pred_check
          %p275 = pneg %p98
        $region46: #{tpu_custom_call.1} parent=35 // pred_check_branch
          %277 = sbr.rel (%p275) target = $region48
        $region47: #{tpu_custom_call.1} parent=35 // pred_region
          %278 = dma.done [#allocation7], 16
        $region48: #{tpu_custom_call.1} parent=35 // pred_fallthru
          _
        // Predicated region
        $region49: #{tpu_custom_call.1} parent=35 // pred_check
          %p279 = pneg %p119
        $region50: #{tpu_custom_call.1} parent=35 // pred_check_branch
          %281 = sbr.rel (%p279) target = $region52
        $region51: #{tpu_custom_call.1} parent=35 // pred_region
          %282 = dma.done [#allocation10], 128
        $region52: #{tpu_custom_call.1} parent=35 // pred_fallthru
          _
        %s283 = sand.u32 %s38, 1
        %s284 = scalar_lea.sflag [#allocation4], %s283
        %s285 = sand.u32 %s38, 1
        %s286 = smul.addr %s285, 8
        %s287 = scalar_lea.vmem [#allocation3], %s286
        %p288 = pneg %p51
        %p289 = pneg %p48
        %s290 = sand.u32 %s30, 1
        %s291 = scalar_lea.sflag [#allocation7], %s290
        %s292 = sand.u32 %s64, 1
        %s293 = smul.addr %s292, 8
        %s294 = scalar_lea.vmem [#allocation6], %s293
        %p295 = pneg %p77
        %p296 = pneg %p74
        %p297 = pneg %p98
        %p298 = pneg %p95
        %p299 = pneg %p119
        %p300 = pneg %p116
        %p301 = pneg %p145
        %p302 = pneg %p142
        %s303 = sand.u32 %s132, 1
        %s304 = scalar_lea.sflag [#allocation5], %s303
        %s305 = sand.u32 %s132, 1
        %s306 = smul.addr %s305, 8
        %s307 = scalar_lea.vmem [#allocation11], %s306
        %p308 = pneg %p171
        %p309 = pneg %p168
        %s310 = sand.u32 %s158, 1
        %s311 = scalar_lea.sflag [#allocation13], %s310
        %s312 = sand.u32 %s158, 1
        %s313 = smul.addr %s312, 8
        %s314 = scalar_lea.vmem [#allocation12], %s313
        %v316 = vld [vmem:[%s261] sm:$0xff]
        %v317 = vld [vmem:[%s270] sm:$0xff]
        %v318 = vld [vmem:[#allocation8] sm:$0x1]
        %v319 = vld [vmem:[#allocation9] sm:$0xf]
        %v320 = vld [vmem:[#allocation9 + $0x4] sm:$0xf]
        %v321 = vlaneseq
        %v322 = vand.u32 %v321, 127
        %323 = vset.pattern.permute.xlu0 0
        %324 = vperm.xlu0 %323, %v316
        %v325 = vpop.permute.xlu0 %324
        %vm326 = vcmp.ge.s32.totalorder %v322, %v325
        %327 = vset.pattern.permute.xlu0 0
        %328 = vperm.xlu0 %327, %v317
        %v329 = vpop.permute.xlu0 %328
        %vm330 = vcmp.le.s32.totalorder %v322, %v329
        %vm331 = vmand %vm326, %vm330
        %v333 = vlaneseq
        %v334 = vshrl.u32 %v333, 7
        %v335 = vsub.s32 0, %v334
        %v336 = vrot.slane %v318, %v335
        %v338 = vsel %vm331, %v336, -inf
        %vm339 = vcmask 130048
        %v340 = vsel %vm339, %v338, -inf
        %341 = vmax.xlane.f32.xlu0 %v340
        %v342 = vpop.xlane.xlu0 %341
        %v343 = vsub.f32 %v336, %v342
        %v344 = vmul.f32 %v343, 1.442695
        %v345 = vpow.pop %v344
        %v346 = vsel %vm331, %v345, 0.0
        %v347 = vsel %vm339, %v346, 0.0
        %348 = vadd.xlane.f32.xlu0 %v347
        %v349 = vpop.xlane.xlu0 %348
        %v350 = vadd.s32 %v316, 3
        %vm351 = vcmp.lt.s32.totalorder %v317, %v350
        %v352 = vsel %vm351, %v317, %v350
        %v353 = vsub.s32 %v352, %v316
        %v354 = vadd.s32 %v353, 1
        %v355 = vcvt.s32.f32 %v354
        %356 = vset.pattern.permute.xlu0 0
        %357 = vperm.xlu0 %356, %v352
        %v358 = vpop.permute.xlu0 %357
        %vm359 = vcmp.le.s32.totalorder %v322, %v358
        %vm360 = vmand %vm326, %vm359
        %v361 = vsel %vm360, 1, 0
        %v362 = vcvt.s32.f32 %v361
        %v363 = vsub.s32 %v352, 15
        %vm364 = vcmp.gt.s32.totalorder %v363, 0
        %v365 = vsel %vm364, %v363, 0
        %v366 = vcvt.s32.f32 %v365
        %vm367 = vcmp.eq.s32.totalorder %v322, 15
        %369 = vset.pattern.permute.xlu0 0
        %370 = vperm.xlu0 %369, %v366
        %v371 = vpop.permute.xlu0 %370
        %v373 = vsel %vm367, %v371, 0.0
        %v374 = vadd.f32 %v362, %v373
        %v375 = vrcp.pop %v355
        %v376 = vmul.f32 1.0, %v375
        %378 = vset.pattern.permute.xlu0 0
        %379 = vperm.xlu0 %378, %v376
        %v380 = vpop.permute.xlu0 %379
        %v382 = vmul.f32 %v374, %v380
        %v383 = vpack.c.bf16 %v346, %v346
        %vm384 = vcmask 125952
        %385 = vst.msk [vmem:[#allocation2] sm:$0xf] %vm384, %v383
        %v386 = vpack.c.bf16 %v382, %v382
        %v388 = vrot.slane %v386, 4
        %vm390 = vcmask 130052
        %391 = vst.msk [vmem:[#allocation2] sm:$0xf0] %vm390, %v388
        %v392 = vld [vmem:[#allocation2] sm:$0xff]
        %v395 = vunpack.c.l.b16 %v319
        %v396 = vunpack.c.l.b16 %v320
        %v397 = vpack.c.b16 %v396, %v395
        %v400 = vsel %vm339, %v392, 0
        %402 = vmatprep.subr.bf16.mxu0 0
        %403 = vmatpush1.bf16.msra.mxu0 %v397
        %404 = vmatprep.subr.bf16.mxu0 0
        %405 = vmatpush1.bf16.msra.mxu0 0
        %406 = vmatprep.subr.bf16.mxu0 0
        %407 = vmatpush1.bf16.msra.mxu0 0
        %408 = vmatprep.subr.bf16.mxu0 0
        %409 = vmatpush1.bf16.msra.mxu0 0
        %410 = vmatprep.subr.bf16.mxu0 0
        %411 = vmatpush1.bf16.msra.mxu0 0
        %412 = vmatprep.subr.bf16.mxu0 0
        %413 = vmatpush1.bf16.msra.mxu0 0
        %414 = vmatprep.subr.bf16.mxu0 0
        %415 = vmatpush1.bf16.msra.mxu0 0
        %416 = vmatprep.subr.bf16.mxu0 0
        %417 = vmatpush1.bf16.msra.mxu0 0
        %418 = vmatprep.subr.bf16.mxu0 0
        %419 = vmatpush1.bf16.msra.mxu0 0
        %420 = vmatprep.subr.bf16.mxu0 0
        %421 = vmatpush1.bf16.msra.mxu0 0
        %422 = vmatprep.subr.bf16.mxu0 0
        %423 = vmatpush1.bf16.msra.mxu0 0
        %424 = vmatprep.subr.bf16.mxu0 0
        %425 = vmatpush1.bf16.msra.mxu0 0
        %426 = vmatprep.subr.bf16.mxu0 0
        %427 = vmatpush1.bf16.msra.mxu0 0
        %428 = vmatprep.subr.bf16.mxu0 0
        %429 = vmatpush1.bf16.msra.mxu0 0
        %430 = vmatprep.subr.bf16.mxu0 0
        %431 = vmatpush1.bf16.msra.mxu0 0
        %432 = vmatprep.subr.bf16.mxu0 0
        %433 = vmatpush1.bf16.msra.mxu0 0
        %434 = vmatprep.mubr.bf16.mxu0 0
        %435 = vmatmul.mubr.bf16.gmra.mrb[0].mxu0 %v400
        %v436 = vpop.f32.mrb[0].mxu0
        %v437 = vadd.f32 0.0, %v436
        %v438 = vpop.f32.mrb[0].mxu0
        %v439 = vpop.f32.mrb[0].mxu0
        %v440 = vadd.f32 0.0, %v439
        %v441 = vpop.f32.mrb[0].mxu0
        %442 = vdwg.mxu0
        %v443 = vrcp.pop %v349
        %v444 = vmul.f32 1.0, %v443
        %v445 = vmul.f32 %v437, %v444
        %vm446 = vcmask 261120
        %447 = vst.msk [vmem:[%s307] sm:$0xff] %vm446, %v445
        %448 = vst.msk [vmem:[%s314] sm:$0xff] %vm446, %v440
        %s449 = sand.u32 %s132, 1
        %s450 = scalar_lea.sflag [#allocation5], %s449
        %s451 = sand.u32 %s132, 1
        %s452 = smul.addr %s451, 8
        %s453 = scalar_lea.vmem [#allocation11], %s452
        %s454 = sand.u32 %s158, 1
        %s455 = scalar_lea.sflag [#allocation13], %s454
        %s456 = sand.u32 %s158, 1
        %s457 = smul.addr %s456, 8
        %s458 = scalar_lea.vmem [#allocation12], %s457
        // Predicated region
        $region53: #{tpu_custom_call.1} parent=35 // pred_check
          %p459 = pneg %p142
        $region54: #{tpu_custom_call.1} parent=35 // pred_check_branch
          %461 = sbr.rel (%p459) target = $region56
        $region55: #{tpu_custom_call.1} parent=35 // pred_region
          %s463 = ssub.s32 128, 128
          %464 = vsyncadd %s450, %s463
          %s465 = smul.addr %s30, 128
          %s466 = scalar_lea.hbm %s4, %s465
          %s468 = sshll.u32 %s453, 4
          %s469 = int_to_ptr.vmem [resolvable:$true] %s468
          %471 = dma.vmem_to_hbm [thread:$0]  %s469, 128, %s466, %s450
        $region56: #{tpu_custom_call.1} parent=35 // pred_fallthru
          _
        // Predicated region
        $region57: #{tpu_custom_call.1} parent=35 // pred_check
          %p472 = pneg %p168
        $region58: #{tpu_custom_call.1} parent=35 // pred_check_branch
          %474 = sbr.rel (%p472) target = $region60
        $region59: #{tpu_custom_call.1} parent=35 // pred_region
          %s476 = ssub.s32 128, 128
          %477 = vsyncadd %s455, %s476
          %s478 = smul.addr %s30, 128
          %s479 = scalar_lea.hbm %s5, %s478
          %s481 = sshll.u32 %s458, 4
          %s482 = int_to_ptr.vmem [resolvable:$true] %s481
          %484 = dma.vmem_to_hbm [thread:$0]  %s482, 128, %s479, %s455
        $region60: #{tpu_custom_call.1} parent=35 // pred_fallthru
          _
      $region36: #{tpu_custom_call.1} parent=5 // pred_fallthru
        _
      %p485 = scmp.le.s32.totalorder 2, %s25
      // Predicated region
      $region61: #{tpu_custom_call.1} parent=5 // pred_check
        %p486 = pneg %p485
      $region62: #{tpu_custom_call.1} parent=5 // pred_check_branch
        %488 = sbr.rel (%p486) target = $region64
      $region63: #{tpu_custom_call.1} parent=5 // pred_region
        %s489 = ssub.s32 %s25, 2
        // Predicated region
        $region65: #{tpu_custom_call.1} parent=63 // pred_check
          %p490 = pneg %p148
        $region66: #{tpu_custom_call.1} parent=63 // pred_check_branch
          %492 = sbr.rel (%p490) target = $region68
        $region67: #{tpu_custom_call.1} parent=63 // pred_region
          %s493 = sand.u32 %s133, 1
          %s494 = scalar_lea.sflag [#allocation5], %s493
          %s495 = sand.u32 %s133, 1
          %s496 = smul.addr %s495, 8
          %s497 = scalar_lea.vmem [#allocation11], %s496
          %498 = dma.done %s494, 128
        $region68: #{tpu_custom_call.1} parent=63 // pred_fallthru
          _
        // Predicated region
        $region69: #{tpu_custom_call.1} parent=63 // pred_check
          %p499 = pneg %p174
        $region70: #{tpu_custom_call.1} parent=63 // pred_check_branch
          %501 = sbr.rel (%p499) target = $region72
        $region71: #{tpu_custom_call.1} parent=63 // pred_region
          %s502 = sand.u32 %s159, 1
          %s503 = scalar_lea.sflag [#allocation13], %s502
          %s504 = sand.u32 %s159, 1
          %s505 = smul.addr %s504, 8
          %s506 = scalar_lea.vmem [#allocation12], %s505
          %507 = dma.done %s503, 128
        $region72: #{tpu_custom_call.1} parent=63 // pred_fallthru
          _
      $region64: #{tpu_custom_call.1} parent=5 // pred_fallthru
        _
    $region6: #{tpu_custom_call.1} parent=1 // loop_footer
      %s29 = sadd.s32 1, %s25
    $region7: #{tpu_custom_call.1} parent=1 // loop_footer_branch
      %24 = sbr.rel target = $region3
    $region8: #{tpu_custom_call.1} parent=1 // loop_exit
      _
    %508 = vsyncpa [#allocation4], 1
    %s509 = scalar_lea.sflag [#allocation4], 1
    %510 = vsyncpa %s509, 1
    %511 = vsyncpa [#allocation7], 1
    %s512 = scalar_lea.sflag [#allocation7], 1
    %513 = vsyncpa %s512, 1
    %514 = vsyncpa [#allocation10], 1
    %515 = vsyncpa [#allocation5], 1
    %s516 = scalar_lea.sflag [#allocation5], 1
    %517 = vsyncpa %s516, 1
    %518 = vsyncpa [#allocation13], 1
    %s519 = scalar_lea.sflag [#allocation13], 1
    %520 = vsyncpa %s519, 1

</llo_original>
